<compile_context>
chip_gen: v6e
topology: v6e:2x2x1
jax: 0.10.0
libtpu: 0.0.40
codegen_flags: <defaults>
</compile_context>

<pallas_src>
import math
from dataclasses import dataclass

import jax
import jax.numpy as jnp
from jax.experimental import pallas as pl
from jax.experimental.pallas import tpu as pltpu


@dataclass(frozen=True)
class PerceiverConfig:
    input_len: int = 16
    input_dim: int = 1
    latent_dim: int = 1
    num_heads: int = 1            # single head -> no head split needed
    output_len: int = 1
    output_dim: int = 1
    decoder_cross_attention: bool = True
    decoder_projection: bool = False
    # Substituted defaults (not specified by the reference snippet):
    num_latents: int = 32
    num_self_attn_layers: int = 2
    mlp_widening: int = 4


# Order in which each attention block's parameters are packed into the single
# parameter buffer.  Weights are stored as (in_features, out_features) except
# w2, which is packed transposed (out_features, in_features) so the N==1
# contraction m @ w2 becomes a broadcast multiply + lane reduce with no
# in-kernel transpose.
_BLOCK_PARAM_ORDER = (
    "lnq_g", "lnq_b", "lnkv_g", "lnkv_b",
    "wq", "bq", "wk", "bk", "wv", "bv", "wo", "bo",
    "lnm_g", "lnm_b", "w1", "b1", "w2", "b2",
)
_PACK_TRANSPOSED = frozenset({"w2"})
_NBP = len(_BLOCK_PARAM_ORDER)


# -----------------------------------------------------------------------------
# Parameter init (deterministic, in-script) and packing
# -----------------------------------------------------------------------------
def _init_linear(key, din, dout, scale=0.02):
    kw, kb = jax.random.split(key)
    w = scale * jax.random.normal(kw, (din, dout), jnp.float32)
    b = scale * jax.random.normal(kb, (1, dout), jnp.float32)
    return w, b


def _init_block(key, dq, dkv, d_attn, d_hidden):
    ks = jax.random.split(key, 6)
    blk = {
        "lnq_g": jnp.ones((1, dq), jnp.float32),
        "lnq_b": jnp.zeros((1, dq), jnp.float32),
        "lnkv_g": jnp.ones((1, dkv), jnp.float32),
        "lnkv_b": jnp.zeros((1, dkv), jnp.float32),
        "lnm_g": jnp.ones((1, dq), jnp.float32),
        "lnm_b": jnp.zeros((1, dq), jnp.float32),
    }
    blk["wq"], blk["bq"] = _init_linear(ks[0], dq, d_attn)
    blk["wk"], blk["bk"] = _init_linear(ks[1], dkv, d_attn)
    blk["wv"], blk["bv"] = _init_linear(ks[2], dkv, d_attn)
    blk["wo"], blk["bo"] = _init_linear(ks[3], d_attn, dq)
    blk["w1"], blk["b1"] = _init_linear(ks[4], dq, d_hidden)
    blk["w2"], blk["b2"] = _init_linear(ks[5], d_hidden, dq)
    return blk


def init_params(key, cfg: PerceiverConfig):
    n = cfg.num_self_attn_layers
    ks = jax.random.split(key, 5 + n)
    d = cfg.latent_dim
    hidden = cfg.mlp_widening * d
    return {
        "pos_emb": 0.02 * jax.random.normal(
            ks[0], (cfg.input_len, cfg.input_dim), jnp.float32),
        "latents": 0.02 * jax.random.normal(
            ks[1], (cfg.num_latents, d), jnp.float32),
        "output_query": 0.02 * jax.random.normal(
            ks[2], (cfg.output_len, d), jnp.float32),
        "enc_cross": _init_block(ks[3], d, cfg.input_dim, d, hidden),
        "self_blocks": tuple(
            _init_block(ks[4 + i], d, d, d, hidden) for i in range(n)),
        "dec_cross": _init_block(ks[4 + n], d, d, d, hidden),
    }


def pack_params(params):
    """Packs every parameter into one (rows, width) f32 buffer.

    Each 2-D parameter occupies a sublane-aligned row range: row offsets are
    rounded up to multiples of 8 so every in-kernel slice is an aligned (8,128)
    tile access.  Returns (packed_buffer, offsets) where offsets[i] is the
    static (row_offset, rows, cols) of the i-th parameter in the flat ordering
    [pos_emb, latents, output_query, enc_block..., self_blocks..., dec_block...].
    One packed buffer = one DMA / one BlockSpec instead of ~75 padded tensors.
    """
    arrs = [params["pos_emb"], params["latents"], params["output_query"]]
    for blk in (params["enc_cross"], *params["self_blocks"],
                params["dec_cross"]):
        for k in _BLOCK_PARAM_ORDER:
            a = blk[k]
            if k in _PACK_TRANSPOSED:
                a = a.T                       # store w2 as (dq, hidden)
            arrs.append(a)

    width = max(int(a.shape[1]) for a in arrs)
    offsets, rows, r = [], [], 0
    for a in arrs:
        nr, nc = int(a.shape[0]), int(a.shape[1])
        offsets.append((r, nr, nc))
        nr_pad = -(-nr // 8) * 8              # sublane-align every row offset
        rows.append(jnp.pad(a.astype(jnp.float32),
                            ((0, nr_pad - nr), (0, width - nc))))
        r += nr_pad
    return jnp.concatenate(rows, axis=0), tuple(offsets)


# -----------------------------------------------------------------------------
# Fused Pallas kernel
# -----------------------------------------------------------------------------
def _build_kernel(cfg: PerceiverConfig, offsets, bchunk):
    """Kernel processing a batch chunk of `bchunk` sequences (statically unrolled)."""
    nblk = cfg.num_self_attn_layers
    eps = 1e-5

    def kernel(x_ref, p_ref, o_ref):
        def get(i):
            r0, nr, nc = offsets[i]
            return p_ref[r0:r0 + nr, :nc]

        def layernorm(x, g, b):
            # A size-1 normalized axis collapses exactly to the bias
            # (x - mean == 0), so skip the mean/var/rsqrt chain entirely.
            if x.shape[-1] == 1:
                return jnp.broadcast_to(b, x.shape)
            mu = jnp.mean(x, axis=-1, keepdims=True)
            var = jnp.mean((x - mu) ** 2, axis=-1, keepdims=True)
            return (x - mu) * jax.lax.rsqrt(var + eps) * g + b

        def matmul(a, b):
            # (M, K) @ (K, N) with VPU fallbacks for degenerate shapes.
            if a.shape[1] == 1:                       # K == 1: outer product
                return a * b
            if b.shape[1] == 1:                       # N == 1: mul + lane reduce
                return jnp.sum(a * b.reshape(1, -1), axis=-1, keepdims=True)
            return jax.lax.dot_general(
                a, b, (((1,), (0,)), ((), ())),
                preferred_element_type=jnp.float32)

        def matmul_t(a, bt):
            # (M, K) @ bt.T where bt is (N, K) (weights packed transposed).
            if bt.shape[0] == 1:                      # N == 1: mul + lane reduce
                return jnp.sum(a * bt, axis=-1, keepdims=True)
            return jax.lax.dot_general(
                a, bt, (((1,), (1,)), ((), ())),
                preferred_element_type=jnp.float32)

        def softmax_lastdim(s):
            s = s - jnp.max(s, axis=-1, keepdims=True)
            p = jnp.exp(s)
            return p * pl.reciprocal(jnp.sum(p, axis=-1, keepdims=True),
                                     approx=True)

        def block(xq, xkv, bp):
            (lnq_g, lnq_b, lnkv_g, lnkv_b, wq, bq, wk, bk, wv, bv,
             wo, bo, lnm_g, lnm_b, w1, b1, w2t, b2) = bp
            dkv = xkv.shape[1]
            d_attn = wq.shape[1]
            Lk = xkv.shape[0]
            scale = 1.0 / math.sqrt(float(d_attn))

            qn = layernorm(xq, lnq_g, lnq_b)
            q = matmul(qn, wq) + bq                           # (Lq, d_attn)

            if dkv == 1 and d_attn == 1:
                # Degenerate feature dims: layernorm(xkv) is an exact broadcast
                # of lnkv_b, so every row of k and v equals the same scalar.
                # Build them directly in lane-major (1, Lk) row form so the
                # score outer product and attn@v are broadcast multiplies plus
                # a lane reduce -- no MXU round trip, no transposes.  This is
                # mathematically identical to the general path for these dims.
                k_row = jnp.broadcast_to(lnkv_b * wk + bk, (1, Lk))
                v_row = jnp.broadcast_to(lnkv_b * wv + bv, (1, Lk))
                attn = softmax_lastdim((q * k_row) * scale)   # (Lq, Lk)
                o = jnp.sum(attn * v_row, axis=-1, keepdims=True)  # (Lq, 1)
            else:
                kvn = layernorm(xkv, lnkv_g, lnkv_b)
                k = matmul(kvn, wk) + bk                      # (Lk, d_attn)
                v = matmul(kvn, wv) + bv                      # (Lk, d_attn)
                attn = softmax_lastdim(matmul_t(q, k) * scale)
                o = matmul(attn, v)                           # (Lq, d_attn)

            o = matmul(o, wo) + bo                            # (Lq, dq)
            h = xq + o
            hn = layernorm(h, lnm_g, lnm_b)
            m = matmul(hn, w1) + b1                           # (Lq, hidden)
            # TODO(synk): PyTorch nn.GELU defaults to the exact erf form; the
            # tanh approximation is used here for a guaranteed Mosaic lowering.
            m = jax.nn.gelu(m, approximate=True)
            m = matmul_t(m, w2t) + b2                         # (Lq, dq)
            return h + m

        pos = get(0)          # (input_len, input_dim)
        lat = get(1)          # (num_latents, latent_dim)
        outq = get(2)         # (output_len, latent_dim)
        n_blocks = 2 + nblk   # encoder cross + self-attn blocks + decoder cross
        bparams = [tuple(get(3 + bi * _NBP + j) for j in range(_NBP))
                   for bi in range(n_blocks)]

        # The batch chunk is tiny and static -> unroll it (do NOT convert to a
        # loop): the independent per-sequence chains interleave in one basic
        # block and hide EUP/XLU latency in this latency-bound kernel.
        for b in range(bchunk):
            h0 = x_ref[b] + pos                      # trainable pos encoding
            z = block(lat, h0, bparams[0])           # encoder cross-attention
            for i in range(nblk):
                z = block(z, z, bparams[1 + i])      # latent self-attention
            # decoder cross-attention (decoder_projection=False -> no proj)
            o_ref[b] = block(outq, z, bparams[1 + nblk])

    return kernel


def build_forward(cfg: PerceiverConfig, offsets):
    """Whole StockDataPrediction forward as ONE pallas_call."""

    # v7x has two TensorCores per chip: shard the batch across them with a
    # parallel grid axis.  Single-TC chips (v5e/v6e) keep the no-grid form.
    try:
        kind = jax.devices()[0].device_kind.lower()
    except Exception:  # pragma: no cover - defensive, default to single core
        kind = ""
    multi_core = ("v7" in kind) or ("7x" in kind)

    @jax.jit
    def forward(packed_params, x):
        batch, seq_len, in_dim = (int(s) for s in x.shape)
        rows, width = (int(s) for s in packed_params.shape)
        out_shape = jax.ShapeDtypeStruct(
            (batch, cfg.output_len, cfg.latent_dim), jnp.float32)

        if multi_core and batch > 1:
            # One batch element per grid step; "parallel" lets the cores split
            # the axis.  Params use a constant index_map -> stay VMEM resident.
            kernel = _build_kernel(cfg, offsets, 1)
            return pl.pallas_call(
                kernel,
                out_shape=out_shape,
                grid=(batch,),
                in_specs=[pl.BlockSpec((1, seq_len, in_dim),
                                       lambda b: (b, 0, 0)),
                          pl.BlockSpec((rows, width), lambda b: (0, 0))],
                out_specs=pl.BlockSpec(
                    (1, cfg.output_len, cfg.latent_dim), lambda b: (b, 0, 0)),
                compiler_params=pltpu.CompilerParams(
                    dimension_semantics=("parallel",)),
            )(x, packed_params)

        # Single-core chips: one launch, one block, everything VMEM resident.
        kernel = _build_kernel(cfg, offsets, batch)
        return pl.pallas_call(
            kernel,
            out_shape=out_shape,
            in_specs=[pl.BlockSpec(memory_space=pltpu.MemorySpace.VMEM),
                      pl.BlockSpec(memory_space=pltpu.MemorySpace.VMEM)],
            out_specs=pl.BlockSpec(memory_space=pltpu.MemorySpace.VMEM),
        )(x, packed_params)

    return forward


# -----------------------------------------------------------------------------
# Plain-JAX reference (for validation)
# -----------------------------------------------------------------------------
def reference_forward(params, x):
    def layernorm(t, g, b):
        mu = jnp.mean(t, axis=-1, keepdims=True)
        var = jnp.mean((t - mu) ** 2, axis=-1, keepdims=True)
        return (t - mu) * jax.lax.rsqrt(var + 1e-5) * g + b

    def block(xq, xkv, p):
        qn = layernorm(xq, p["lnq_g"], p["lnq_b"])
        kvn = layernorm(xkv, p["lnkv_g"], p["lnkv_b"])
        q = qn @ p["wq"] + p["bq"]
        k = kvn @ p["wk"] + p["bk"]
        v = kvn @ p["wv"] + p["bv"]
        s = (q @ k.T) / jnp.sqrt(jnp.float32(q.shape[-1]))
        a = jax.nn.softmax(s, axis=-1)
        o = (a @ v) @ p["wo"] + p["bo"]
        h = xq + o
        hn = layernorm(h, p["lnm_g"], p["lnm_b"])
        m = jax.nn.gelu(hn @ p["w1"] + p["b1"], approximate=True)
        m = m @ p["w2"] + p["b2"]
        return h + m

    outs = []
    for b in range(x.shape[0]):
        h0 = x[b] + params["pos_emb"]
        z = block(params["latents"], h0, params["enc_cross"])
        for bp in params["self_blocks"]:
            z = block(z, z, bp)
        outs.append(block(params["output_query"], z, params["dec_cross"]))
    return jnp.stack(outs, axis=0)


# -----------------------------------------------------------------------------
if __name__ == "__main__":
    cfg = PerceiverConfig()
    pkey, xkey = jax.random.split(jax.random.PRNGKey(0))
    params = init_params(pkey, cfg)
    packed, offsets = pack_params(params)

    batch = 2
    x = jax.random.normal(xkey, (batch, cfg.input_len, cfg.input_dim),
                          jnp.float32)

    forward = build_forward(cfg, offsets)
    y = forward(packed, x)
    jax.block_until_ready(y)

    assert y.shape == (batch, cfg.output_len, cfg.latent_dim)
    assert bool(jnp.all(jnp.isfinite(y)))

    y_ref = reference_forward(params, x)
    assert bool(jnp.allclose(y, y_ref, atol=1e-3, rtol=1e-2))

    print("KERNEL_OK")
</pallas_src>

<mosaic_0001>
module attributes {stable_mosaic.version = 11 : i64} {
  func.func @kernel(%arg0: memref<2x16x1xf32, #tpu.memory_space<vmem>>, %arg1: memref<632x4xf32, #tpu.memory_space<vmem>>, %arg2: memref<2x1x1xf32, #tpu.memory_space<vmem>>) attributes {dimension_semantics = [], scalar_prefetch = 0 : i64, scratch_operands = 0 : i64, tpu.core_type = #tpu.core_type<tc>} {
    %c48 = arith.constant 48 : index
    %c0 = arith.constant 0 : index
    %0 = vector.load %arg1[%c48, %c0] : memref<632x4xf32, #tpu.memory_space<vmem>>, vector<1x1xf32>
    %c496 = arith.constant 496 : index
    %c0_0 = arith.constant 0 : index
    %1 = vector.load %arg1[%c496, %c0_0] : memref<632x4xf32, #tpu.memory_space<vmem>>, vector<1x1xf32>
    %c512 = arith.constant 512 : index
    %c0_1 = arith.constant 0 : index
    %2 = vector.load %arg1[%c512, %c0_1] : memref<632x4xf32, #tpu.memory_space<vmem>>, vector<1x1xf32>
    %c520 = arith.constant 520 : index
    %c0_2 = arith.constant 0 : index
    %3 = vector.load %arg1[%c520, %c0_2] : memref<632x4xf32, #tpu.memory_space<vmem>>, vector<1x1xf32>
    %c528 = arith.constant 528 : index
    %c0_3 = arith.constant 0 : index
    %4 = vector.load %arg1[%c528, %c0_3] : memref<632x4xf32, #tpu.memory_space<vmem>>, vector<1x1xf32>
    %c536 = arith.constant 536 : index
    %c0_4 = arith.constant 0 : index
    %5 = vector.load %arg1[%c536, %c0_4] : memref<632x4xf32, #tpu.memory_space<vmem>>, vector<1x1xf32>
    %c544 = arith.constant 544 : index
    %c0_5 = arith.constant 0 : index
    %6 = vector.load %arg1[%c544, %c0_5] : memref<632x4xf32, #tpu.memory_space<vmem>>, vector<1x1xf32>
    %c552 = arith.constant 552 : index
    %c0_6 = arith.constant 0 : index
    %7 = vector.load %arg1[%c552, %c0_6] : memref<632x4xf32, #tpu.memory_space<vmem>>, vector<1x1xf32>
    %c560 = arith.constant 560 : index
    %c0_7 = arith.constant 0 : index
    %8 = vector.load %arg1[%c560, %c0_7] : memref<632x4xf32, #tpu.memory_space<vmem>>, vector<1x1xf32>
    %c568 = arith.constant 568 : index
    %c0_8 = arith.constant 0 : index
    %9 = vector.load %arg1[%c568, %c0_8] : memref<632x4xf32, #tpu.memory_space<vmem>>, vector<1x1xf32>
    %c576 = arith.constant 576 : index
    %c0_9 = arith.constant 0 : index
    %10 = vector.load %arg1[%c576, %c0_9] : memref<632x4xf32, #tpu.memory_space<vmem>>, vector<1x1xf32>
    %c592 = arith.constant 592 : index
    %c0_10 = arith.constant 0 : index
    %11 = vector.load %arg1[%c592, %c0_10] : memref<632x4xf32, #tpu.memory_space<vmem>>, vector<1x1xf32>
    %c600 = arith.constant 600 : index
    %c0_11 = arith.constant 0 : index
    %12 = vector.load %arg1[%c600, %c0_11] : memref<632x4xf32, #tpu.memory_space<vmem>>, vector<1x4xf32>
    %c608 = arith.constant 608 : index
    %c0_12 = arith.constant 0 : index
    %13 = vector.load %arg1[%c608, %c0_12] : memref<632x4xf32, #tpu.memory_space<vmem>>, vector<1x4xf32>
    %c616 = arith.constant 616 : index
    %c0_13 = arith.constant 0 : index
    %14 = vector.load %arg1[%c616, %c0_13] : memref<632x4xf32, #tpu.memory_space<vmem>>, vector<1x4xf32>
    %c624 = arith.constant 624 : index
    %c0_14 = arith.constant 0 : index
    %15 = vector.load %arg1[%c624, %c0_14] : memref<632x4xf32, #tpu.memory_space<vmem>>, vector<1x1xf32>
    %16 = arith.mulf %1, %3 : vector<1x1xf32>
    %17 = arith.addf %16, %4 : vector<1x1xf32>
    %18 = arith.mulf %2, %5 : vector<1x1xf32>
    %19 = arith.addf %18, %6 : vector<1x1xf32>
    %20 = vector.shape_cast %19 : vector<1x1xf32> to vector<1x1xf32>
    %21 = vector.broadcast %20 : vector<1x1xf32> to vector<1x32xf32>
    %22 = arith.mulf %2, %7 : vector<1x1xf32>
    %23 = arith.addf %22, %8 : vector<1x1xf32>
    %24 = vector.shape_cast %23 : vector<1x1xf32> to vector<1x1xf32>
    %25 = vector.broadcast %24 : vector<1x1xf32> to vector<1x32xf32>
    %26 = vector.broadcast %17 : vector<1x1xf32> to vector<1x32xf32>
    %27 = arith.mulf %26, %21 : vector<1x32xf32>
    %cst = arith.constant 1.000000e+00 : f32
    %28 = vector.broadcast %cst : f32 to vector<1x32xf32>
    %29 = arith.mulf %27, %28 : vector<1x32xf32>
    %cst_15 = arith.constant dense<0xFF800000> : vector<1xf32>
    %30 = vector.multi_reduction <maximumf>, %29, %cst_15 [1] : vector<1x32xf32> to vector<1xf32>
    %31 = vector.shape_cast %30 : vector<1xf32> to vector<1x1xf32>
    %32 = vector.broadcast %31 : vector<1x1xf32> to vector<1x32xf32>
    %33 = arith.subf %29, %32 : vector<1x32xf32>
    %34 = math.exp %33 : vector<1x32xf32>
    %cst_16 = arith.constant dense<0.000000e+00> : vector<1xf32>
    %35 = vector.multi_reduction <add>, %34, %cst_16 [1] : vector<1x32xf32> to vector<1xf32>
    %36 = vector.shape_cast %35 : vector<1xf32> to vector<1x1xf32>
    %37 = tpu.reciprocal %36 {approx = true} : vector<1x1xf32> -> vector<1x1xf32>
    %38 = vector.broadcast %37 : vector<1x1xf32> to vector<1x32xf32>
    %39 = arith.mulf %34, %38 : vector<1x32xf32>
    %40 = arith.mulf %39, %25 : vector<1x32xf32>
    %cst_17 = arith.constant dense<0.000000e+00> : vector<1xf32>
    %41 = vector.multi_reduction <add>, %40, %cst_17 [1] : vector<1x32xf32> to vector<1xf32>
    %42 = vector.shape_cast %41 : vector<1xf32> to vector<1x1xf32>
    %43 = arith.mulf %42, %9 : vector<1x1xf32>
    %44 = arith.addf %43, %10 : vector<1x1xf32>
    %45 = arith.addf %0, %44 : vector<1x1xf32>
    %46 = vector.broadcast %11 : vector<1x1xf32> to vector<1x4xf32>
    %47 = arith.mulf %46, %12 : vector<1x4xf32>
    %48 = arith.addf %47, %13 : vector<1x4xf32>
    %49 = arith.mulf %48, %48 : vector<1x4xf32>
    %50 = arith.mulf %48, %49 : vector<1x4xf32>
    %cst_18 = arith.constant 4.471500e-02 : f32
    %51 = vector.broadcast %cst_18 : f32 to vector<1x4xf32>
    %52 = arith.mulf %51, %50 : vector<1x4xf32>
    %53 = arith.addf %48, %52 : vector<1x4xf32>
    %cst_19 = arith.constant 0.797884583 : f32
    %54 = vector.broadcast %cst_19 : f32 to vector<1x4xf32>
    %55 = arith.mulf %54, %53 : vector<1x4xf32>
    %56 = math.tanh %55 : vector<1x4xf32>
    %cst_20 = arith.constant 1.000000e+00 : f32
    %57 = vector.broadcast %cst_20 : f32 to vector<1x4xf32>
    %58 = arith.addf %57, %56 : vector<1x4xf32>
    %cst_21 = arith.constant 5.000000e-01 : f32
    %59 = vector.broadcast %cst_21 : f32 to vector<1x4xf32>
    %60 = arith.mulf %59, %58 : vector<1x4xf32>
    %61 = arith.mulf %48, %60 : vector<1x4xf32>
    %62 = arith.mulf %61, %14 : vector<1x4xf32>
    %cst_22 = arith.constant dense<0.000000e+00> : vector<1xf32>
    %63 = vector.multi_reduction <add>, %62, %cst_22 [1] : vector<1x4xf32> to vector<1xf32>
    %64 = vector.shape_cast %63 : vector<1xf32> to vector<1x1xf32>
    %65 = arith.addf %64, %15 : vector<1x1xf32>
    %66 = arith.addf %45, %65 : vector<1x1xf32>
    %c0_23 = arith.constant 0 : index
    %c0_24 = arith.constant 0 : index
    %c0_25 = arith.constant 0 : index
    %67 = vector.load %arg2[%c0_23, %c0_24, %c0_25] : memref<2x1x1xf32, #tpu.memory_space<vmem>>, vector<1x1x1xf32>
    %68 = vector.shape_cast %67 : vector<1x1x1xf32> to vector<1x1xf32>
    %69 = vector.shape_cast %66 : vector<1x1xf32> to vector<1x1x1xf32>
    tpu.vector_store %arg2[%c0_23, %c0_24, %c0_25], %69 {strides = array<i32>} : memref<2x1x1xf32, #tpu.memory_space<vmem>>, vector<1x1x1xf32>,
    %70 = arith.mulf %1, %3 : vector<1x1xf32>
    %71 = arith.addf %70, %4 : vector<1x1xf32>
    %72 = arith.mulf %2, %5 : vector<1x1xf32>
    %73 = arith.addf %72, %6 : vector<1x1xf32>
    %74 = vector.shape_cast %73 : vector<1x1xf32> to vector<1x1xf32>
    %75 = vector.broadcast %74 : vector<1x1xf32> to vector<1x32xf32>
    %76 = arith.mulf %2, %7 : vector<1x1xf32>
    %77 = arith.addf %76, %8 : vector<1x1xf32>
    %78 = vector.shape_cast %77 : vector<1x1xf32> to vector<1x1xf32>
    %79 = vector.broadcast %78 : vector<1x1xf32> to vector<1x32xf32>
    %80 = vector.broadcast %71 : vector<1x1xf32> to vector<1x32xf32>
    %81 = arith.mulf %80, %75 : vector<1x32xf32>
    %cst_26 = arith.constant 1.000000e+00 : f32
    %82 = vector.broadcast %cst_26 : f32 to vector<1x32xf32>
    %83 = arith.mulf %81, %82 : vector<1x32xf32>
    %cst_27 = arith.constant dense<0xFF800000> : vector<1xf32>
    %84 = vector.multi_reduction <maximumf>, %83, %cst_27 [1] : vector<1x32xf32> to vector<1xf32>
    %85 = vector.shape_cast %84 : vector<1xf32> to vector<1x1xf32>
    %86 = vector.broadcast %85 : vector<1x1xf32> to vector<1x32xf32>
    %87 = arith.subf %83, %86 : vector<1x32xf32>
    %88 = math.exp %87 : vector<1x32xf32>
    %cst_28 = arith.constant dense<0.000000e+00> : vector<1xf32>
    %89 = vector.multi_reduction <add>, %88, %cst_28 [1] : vector<1x32xf32> to vector<1xf32>
    %90 = vector.shape_cast %89 : vector<1xf32> to vector<1x1xf32>
    %91 = tpu.reciprocal %90 {approx = true} : vector<1x1xf32> -> vector<1x1xf32>
    %92 = vector.broadcast %91 : vector<1x1xf32> to vector<1x32xf32>
    %93 = arith.mulf %88, %92 : vector<1x32xf32>
    %94 = arith.mulf %93, %79 : vector<1x32xf32>
    %cst_29 = arith.constant dense<0.000000e+00> : vector<1xf32>
    %95 = vector.multi_reduction <add>, %94, %cst_29 [1] : vector<1x32xf32> to vector<1xf32>
    %96 = vector.shape_cast %95 : vector<1xf32> to vector<1x1xf32>
    %97 = arith.mulf %96, %9 : vector<1x1xf32>
    %98 = arith.addf %97, %10 : vector<1x1xf32>
    %99 = arith.addf %0, %98 : vector<1x1xf32>
    %100 = vector.broadcast %11 : vector<1x1xf32> to vector<1x4xf32>
    %101 = arith.mulf %100, %12 : vector<1x4xf32>
    %102 = arith.addf %101, %13 : vector<1x4xf32>
    %103 = arith.mulf %102, %102 : vector<1x4xf32>
    %104 = arith.mulf %102, %103 : vector<1x4xf32>
    %cst_30 = arith.constant 4.471500e-02 : f32
    %105 = vector.broadcast %cst_30 : f32 to vector<1x4xf32>
    %106 = arith.mulf %105, %104 : vector<1x4xf32>
    %107 = arith.addf %102, %106 : vector<1x4xf32>
    %cst_31 = arith.constant 0.797884583 : f32
    %108 = vector.broadcast %cst_31 : f32 to vector<1x4xf32>
    %109 = arith.mulf %108, %107 : vector<1x4xf32>
    %110 = math.tanh %109 : vector<1x4xf32>
    %cst_32 = arith.constant 1.000000e+00 : f32
    %111 = vector.broadcast %cst_32 : f32 to vector<1x4xf32>
    %112 = arith.addf %111, %110 : vector<1x4xf32>
    %cst_33 = arith.constant 5.000000e-01 : f32
    %113 = vector.broadcast %cst_33 : f32 to vector<1x4xf32>
    %114 = arith.mulf %113, %112 : vector<1x4xf32>
    %115 = arith.mulf %102, %114 : vector<1x4xf32>
    %116 = arith.mulf %115, %14 : vector<1x4xf32>
    %cst_34 = arith.constant dense<0.000000e+00> : vector<1xf32>
    %117 = vector.multi_reduction <add>, %116, %cst_34 [1] : vector<1x4xf32> to vector<1xf32>
    %118 = vector.shape_cast %117 : vector<1xf32> to vector<1x1xf32>
    %119 = arith.addf %118, %15 : vector<1x1xf32>
    %120 = arith.addf %99, %119 : vector<1x1xf32>
    %c1 = arith.constant 1 : index
    %c0_35 = arith.constant 0 : index
    %c0_36 = arith.constant 0 : index
    %121 = vector.load %arg2[%c1, %c0_35, %c0_36] : memref<2x1x1xf32, #tpu.memory_space<vmem>>, vector<1x1x1xf32>
    %122 = vector.shape_cast %121 : vector<1x1x1xf32> to vector<1x1xf32>
    %123 = vector.shape_cast %120 : vector<1x1xf32> to vector<1x1x1xf32>
    tpu.vector_store %arg2[%c1, %c0_35, %c0_36], %123 {strides = array<i32>} : memref<2x1x1xf32, #tpu.memory_space<vmem>>, vector<1x1x1xf32>,
    return
  }
}

</mosaic_0001>

<llo_original>
// kernel: forward.1
$region0: #{forward.1}
  #allocation0 [shape = 'u32[]', space=smem, size = 0x4, offset = 0x4, fixed_abs, tag = 'smem constant byte address 0x4 - core index']
  #allocation1 [shape = 'u32[144,128]{1,0:T(1,128)}', space=vmem, size = 0x12000, scoped, tag = 'internal scratch']
  %s0 = inlined_call_operand.vmem [shape: f32[2,16,1], index: 0, kind: input, shape index: {}]
  %s1 = inlined_call_operand.vmem [shape: f32[632,4], index: 1, kind: input, shape index: {}]
  %s2 = inlined_call_operand.vmem [shape: f32[2,1,1], index: 2, kind: output, shape index: {}]
  %s3 = sld [smem:[#allocation0]]
  $region18: #{forward.1} parent=0
    _
  %s5 = ssub.s32 1, %s3
  %s6 = scalar_select 0, %s5, %s3
  // Predicated region
  $region2: #{forward.1} parent=0 // pred_check
    _
  $region3: #{forward.1} parent=0 // pred_check_branch
    %8 = sbr.rel (0) target = $region5
  $region4: #{forward.1} parent=0 // pred_region
    _
  $region5: #{forward.1} parent=0 // pred_fallthru
    _
  // Predicated region
  $region6: #{forward.1} parent=0 // pred_check
    _
  $region7: #{forward.1} parent=0 // pred_check_branch
    %10 = sbr.rel (0) target = $region9
  $region8: #{forward.1} parent=0 // pred_region
    _
  $region9: #{forward.1} parent=0 // pred_fallthru
    _
  %v11 = vld [vmem:[%s1 + $0x30] sm:$0x1]
  %v12 = vld [vmem:[%s1 + $0x1f0] sm:$0x1]
  %v13 = vld [vmem:[%s1 + $0x200] sm:$0x1]
  %v14 = vld [vmem:[%s1 + $0x208] sm:$0x1]
  %v15 = vld [vmem:[%s1 + $0x210] sm:$0x1]
  %v16 = vld [vmem:[%s1 + $0x218] sm:$0x1]
  %v17 = vld [vmem:[%s1 + $0x220] sm:$0x1]
  %v18 = vld [vmem:[%s1 + $0x228] sm:$0x1]
  %v19 = vld [vmem:[%s1 + $0x230] sm:$0x1]
  %v20 = vld [vmem:[%s1 + $0x238] sm:$0x1]
  %v21 = vld [vmem:[%s1 + $0x240] sm:$0x1]
  %v22 = vld [vmem:[%s1 + $0x250] sm:$0x1]
  %v23 = vld [vmem:[%s1 + $0x258] sm:$0x1]
  %v24 = vld [vmem:[%s1 + $0x260] sm:$0x1]
  %v25 = vld [vmem:[%s1 + $0x268] sm:$0x1]
  %v26 = vld [vmem:[%s1 + $0x270] sm:$0x1]
  %v27 = vmul.f32 %v12, %v14
  %v28 = vadd.f32 %v27, %v15
  %v29 = vmul.f32 %v13, %v16
  %v30 = vadd.f32 %v29, %v17
  %32 = vset.pattern.permute.xlu0 0
  %33 = vperm.xlu0 %32, %v30
  %v34 = vpop.permute.xlu0 %33
  %v36 = vmul.f32 %v13, %v18
  %v37 = vadd.f32 %v36, %v19
  %39 = vset.pattern.permute.xlu0 0
  %40 = vperm.xlu0 %39, %v37
  %v41 = vpop.permute.xlu0 %40
  %44 = vset.pattern.permute.xlu0 0
  %45 = vperm.xlu0 %44, %v28
  %v46 = vpop.permute.xlu0 %45
  %v48 = vmul.f32 %v46, %v34
  %vm49 = vcmask 1040384
  %v50 = vsel %vm49, %v48, -inf
  %v51 = vsub.f32 %v48, %v50
  %v52 = vmul.f32 %v51, 1.442695
  %v53 = vpow.pop %v52
  %vm54 = vcmask 253952
  %v55 = vsel %vm54, %v53, 0.0
  %56 = vadd.xlane.f32.xlu0 %v55
  %v57 = vpop.xlane.xlu0 %56
  %v58 = vrcp.pop %v57
  %v59 = vmul.f32 %v53, %v58
  %v60 = vmul.f32 %v59, %v41
  %v61 = vsel %vm54, %v60, 0.0
  %62 = vadd.xlane.f32.xlu0 %v61
  %v63 = vpop.xlane.xlu0 %62
  %v64 = vmul.f32 %v63, %v20
  %v65 = vadd.f32 %v64, %v21
  %v66 = vadd.f32 %v11, %v65
  %68 = vset.pattern.permute.xlu0 0
  %69 = vperm.xlu0 %68, %v22
  %v70 = vpop.permute.xlu0 %69
  %v72 = vmul.f32 %v70, %v23
  %v73 = vadd.f32 %v72, %v24
  %v74 = vmul.f32 %v73, %v73
  %v75 = vmul.f32 %v73, %v74
  %v76 = vmul.f32 %v75, 0.044715
  %v77 = vadd.f32 %v73, %v76
  %v78 = vmul.f32 %v77, 0.7978846
  %v79 = vtanh.pop %v78
  %v80 = vadd.f32 %v79, 1.0
  %v81 = vmul.f32 %v80, 0.5
  %v82 = vmul.f32 %v73, %v81
  %v83 = vmul.f32 %v82, %v25
  %vm84 = vcmask 24576
  %v85 = vsel %vm84, %v83, 0.0
  %86 = vadd.xlane.f32.xlu0 %v85
  %v87 = vpop.xlane.xlu0 %86
  %v88 = vadd.f32 %v87, %v26
  %v89 = vadd.f32 %v66, %v88
  %vm90 = vcmask 0
  %91 = vst.msk [vmem:[%s2] sm:$0x1] %vm90, %v89
  %s92 = scalar_lea.vmem %s2, 1
  %93 = vst.msk [vmem:[%s92] sm:$0x1] %vm90, %v89
  // Predicated region
  $region10: #{forward.1} parent=0 // pred_check
    _
  $region11: #{forward.1} parent=0 // pred_check_branch
    %95 = sbr.rel (0) target = $region13
  $region12: #{forward.1} parent=0 // pred_region
    _
  $region13: #{forward.1} parent=0 // pred_fallthru
    _
  // Predicated region
  $region14: #{forward.1} parent=0 // pred_check
    _
  $region15: #{forward.1} parent=0 // pred_check_branch
    %97 = sbr.rel (0) target = $region17
  $region16: #{forward.1} parent=0 // pred_region
    _
  $region17: #{forward.1} parent=0 // pred_fallthru
    _

</llo_original>
